<compile_context>
chip_gen: v7x
topology: tpu7x:2x2x1
jax: 0.10.0
libtpu: 0.0.40
codegen_flags: <defaults>
</compile_context>

<pallas_src>
import math

import jax
import jax.numpy as jnp
from jax.experimental import pallas as pl
from jax.experimental.pallas import tpu as pltpu


def _encoder_kernel(top_ref, mask_ref, pe_ref, wred_ref, c0_ref, out_ref):
    # top_ref:  (bb, S, D)  sentence embeddings (f32 or bf16 storage; f32 compute)
    # mask_ref: (bb, S, 1)  per-sentence mask
    # pe_ref:   (S, D)      positional encoding (constant block index -> DMA'd once)
    # wred_ref: (D, 128)    MXU reduction weights: col 0 = 1/D, col 1 = gwc, rest 0
    # c0_ref:   (1, 1)      fused constant  sum(beta*w) + bias
    # out_ref:  (bb, S, 1)
    bb, s, d = top_ref.shape
    rows = bb * s

    x = top_ref[...].astype(jnp.float32)
    m = mask_ref[...].astype(jnp.float32)
    pe = pe_ref[...].astype(jnp.float32)

    # mask + positional encoding; flatten to rows (leading-dim merge -> layout-free).
    n = (x * m + pe[None]).reshape(rows, d)

    # Fixed-weight lane reductions on the idle MXU:
    #   col 0 (weights 1/D) -> row mean, col 1 (weights gwc) -> fused LN-affine + proj.
    red = jnp.dot(n, wred_ref[...], preferred_element_type=jnp.float32)   # (rows, 128)
    mean = red[:, 0:1]
    proj = red[:, 1:2]

    # The single remaining cross-lane (XLU) reduction: E[n^2] for the variance.
    # Single-pass var = E[n^2] - mean^2 in f32 (fine at LayerNorm input scales).
    ex2 = jnp.sum(n * n, axis=-1, keepdims=True) * jnp.float32(1.0 / d)

    var = ex2 - mean * mean
    rstd = jax.lax.rsqrt(var + jnp.float32(1e-6))          # eps = 1e-06 (module)
    logits = rstd * proj + c0_ref[...]                     # (rows,1) + (1,1)
    scores = jax.nn.sigmoid(logits) * m.reshape(rows, 1)

    out_ref[...] = scores.reshape(bb, s, 1).astype(out_ref.dtype)


def make_pos_encoding(seq_len, dim):
    position = jnp.arange(seq_len, dtype=jnp.float32)[:, None]              # (S, 1)
    divterm = jnp.exp(jnp.arange(0, dim, 2, dtype=jnp.float32)
                      * -(math.log(10000.0) / dim))                          # (D/2,)
    pe = jnp.zeros((seq_len, dim), dtype=jnp.float32)
    pe = pe.at[:, 0::2].set(jnp.sin(position * divterm))
    pe = pe.at[:, 1::2].set(jnp.cos(position * divterm))
    return pe                                                                # (S, D)


def _choose_batch_block(B, S, D, top_bytes, mask_bytes):
    """Batch elements per grid step, sized by bytes against a full VMEM accounting."""
    try:
        vmem_cap = int(pltpu.get_tpu_info().vmem_capacity_bytes)
    except Exception:
        vmem_cap = 64 * 1024 * 1024                       # v7x physical (safe everywhere)
    # ~75% of physical, capped at 100 MiB: ~96 MiB on v5e/v6e, 48 MiB on v7x.
    vmem_limit = max(32 * 1024 * 1024, min((vmem_cap * 3) // 4, 100 * 1024 * 1024))
    budget = (vmem_limit * 4) // 5                        # 20% headroom for the compiler

    s8 = -(-S // 8) * 8                                   # sublane-padded S
    # Per-batch-element VMEM bytes (x2 = double-buffered pipeline buffers):
    top_pb = 2 * S * D * top_bytes
    mask_pb = 2 * s8 * 128 * mask_bytes                   # (S,1) block lane-pads to (s8,128)
    out_pb = 2 * s8 * 128 * 4                             # f32 output block, same padding
    per_batch = top_pb + mask_pb + out_pb
    # Buffers shared across grid steps (constant block index): pe + wred + c0 (+slack).
    fixed = 2 * (S * D * 4) + 2 * (D * 128 * 4) + 4096

    max_bb_vmem = max(1, (budget - fixed) // per_batch)
    # ~8 MiB of `top` per step keeps the ~0.35us per-step overhead well under 5%.
    target_bb = max(1, (8 * 1024 * 1024) // max(1, S * D * top_bytes))
    bb = int(max(1, min(B, max_bb_vmem, target_bb)))
    return bb, int(vmem_limit)


def transformer_encoder(top, mask, gamma, beta, wo_w, wo_b):
    """top: (B, S, D), mask: (B, S) -> (B, S) float32 sentence scores.

    Pass `top` in bfloat16 to halve HBM read bytes; compute is f32 either way.
    """
    B, S, D = top.shape
    pe = make_pos_encoding(S, D)                                        # (S, D) f32

    # Mask follows the low-precision storage choice (exact for 0/1 masks).
    mask_dtype = jnp.bfloat16 if top.dtype == jnp.bfloat16 else jnp.float32
    maskf = mask.astype(mask_dtype)[..., None]                          # (B, S, 1)

    # Fold LayerNorm affine (gamma, beta) and the D->1 projection (wo) into one centered
    # weight vector + one scalar (tiny (D,) work, done once in the wrapper):
    #   logits = rsqrt(var + eps) * sum(n * gwc) + c0,
    #   gwc = gamma*w - mean(gamma*w),  c0 = sum(beta*w) + bias.
    w = wo_w.reshape(-1).astype(jnp.float32)                            # (D,)
    gw = gamma.astype(jnp.float32) * w
    gwc = gw - jnp.sum(gw) / D
    wred = jnp.zeros((D, 128), jnp.float32)
    wred = wred.at[:, 0].set(jnp.float32(1.0 / D))                      # row mean
    wred = wred.at[:, 1].set(gwc)                                       # fused projection
    c0 = (jnp.sum(beta.astype(jnp.float32) * w)
          + wo_b.reshape(()).astype(jnp.float32)).reshape(1, 1)

    bb, vmem_limit = _choose_batch_block(B, S, D,
                                         top.dtype.itemsize, maskf.dtype.itemsize)
    n_steps = -(-B // bb)
    # v7x has 2 TensorCores: prefer an even number of steps when the grid is small.
    if 1 < n_steps <= 8 and n_steps % 2 == 1:
        bb = -(-B // (n_steps + 1))
        n_steps = -(-B // bb)

    out = pl.pallas_call(
        _encoder_kernel,
        out_shape=jax.ShapeDtypeStruct((B, S, 1), jnp.float32),
        grid_spec=pltpu.PrefetchScalarGridSpec(
            num_scalar_prefetch=0,
            grid=(n_steps,),
            in_specs=[
                pl.BlockSpec((bb, S, D), lambda i: (i, 0, 0)),   # top (big byte-sized tile)
                pl.BlockSpec((bb, S, 1), lambda i: (i, 0, 0)),   # mask
                pl.BlockSpec((S, D), lambda i: (0, 0)),          # pos encoding (fetched once)
                pl.BlockSpec((D, 128), lambda i: (0, 0)),        # MXU reduction weights
                pl.BlockSpec((1, 1), lambda i: (0, 0)),          # fused constant c0
            ],
            out_specs=pl.BlockSpec((bb, S, 1), lambda i: (i, 0, 0)),
        ),
        compiler_params=pltpu.CompilerParams(
            dimension_semantics=("parallel",),
            vmem_limit_bytes=vmem_limit,
        ),
    )(top, maskf, pe, wred, c0)

    return out[..., 0]                                                   # (B, S)


if __name__ == "__main__":
    B, S, D = 2, 8, 32
    key = jax.random.PRNGKey(0)
    k_top, k_mask, k_w, k_b = jax.random.split(key, 4)

    top = jax.random.normal(k_top, (B, S, D), dtype=jnp.float32)
    mask = (jax.random.uniform(k_mask, (B, S)) > 0.3).astype(jnp.float32)

    # Deterministic parameters (shapes from the module __init__):
    gamma = jnp.ones((D,), dtype=jnp.float32)              # LayerNorm weight
    beta = jnp.zeros((D,), dtype=jnp.float32)              # LayerNorm bias
    bound = 1.0 / math.sqrt(D)
    wo_w = jax.random.uniform(k_w, (1, D), minval=-bound, maxval=bound,
                              dtype=jnp.float32)           # nn.Linear(D, 1).weight
    wo_b = jax.random.uniform(k_b, (1,), minval=-bound, maxval=bound,
                              dtype=jnp.float32)           # nn.Linear(D, 1).bias

    # Pure-JAX reference with the unfused PyTorch math (validates the algebraic fusion).
    pe = make_pos_encoding(S, D)
    n_ref = top * mask[:, :, None] + pe[None]
    mu = jnp.mean(n_ref, axis=-1, keepdims=True)
    var = jnp.mean((n_ref - mu) ** 2, axis=-1, keepdims=True)
    n_norm = (n_ref - mu) / jnp.sqrt(var + 1e-6) * gamma + beta
    ref = jax.nn.sigmoid(n_norm @ wo_w[0] + wo_b[0]) * mask

    # 1) f32 storage path.  Tolerance allows for the MXU's default bf16-multiply /
    #    f32-accumulate path used for the mean/projection reductions (~<=1e-3).
    scores = transformer_encoder(top, mask, gamma, beta, wo_w, wo_b)
    jax.block_until_ready(scores)
    assert jnp.allclose(scores, ref, atol=3e-3, rtol=3e-3), "f32 path mismatch vs reference"

    # 2) bf16 storage path (halves HBM read bytes; kernel upcasts to f32 in-register).
    scores_bf16 = transformer_encoder(top.astype(jnp.bfloat16), mask,
                                      gamma, beta, wo_w, wo_b)
    jax.block_until_ready(scores_bf16)
    assert jnp.allclose(scores_bf16, ref, atol=1e-2, rtol=1e-2), "bf16 path mismatch"

    print("KERNEL_OK")
</pallas_src>

<mosaic_0001>
module attributes {stable_mosaic.version = 11 : i64} {
  func.func @_encoder_kernel(%arg0: i32, %arg1: memref<2x8x32xf32, #tpu.memory_space<vmem>>, %arg2: memref<2x8x1xf32, #tpu.memory_space<vmem>>, %arg3: memref<8x32xf32, #tpu.memory_space<vmem>>, %arg4: memref<32x128xf32, #tpu.memory_space<vmem>>, %arg5: memref<1x1xf32, #tpu.memory_space<vmem>>, %arg6: memref<2x8x1xf32, #tpu.memory_space<vmem>>) attributes {dimension_semantics = [#tpu.dimension_semantics<parallel>], iteration_bounds = array<i64: 1>, scalar_prefetch = 0 : i64, scratch_operands = 0 : i64, tpu.core_type = #tpu.core_type<tc>, window_params = [{transform_indices = @transform_0, window_bounds = array<i64: 2, 8, 32>}, {transform_indices = @transform_1, window_bounds = array<i64: 2, 8, 1>}, {pipeline_mode = #tpu.pipeline_mode<synchronous>, transform_indices = @transform_2, window_bounds = array<i64: 8, 32>}, {pipeline_mode = #tpu.pipeline_mode<synchronous>, transform_indices = @transform_3, window_bounds = array<i64: 32, 128>}, {pipeline_mode = #tpu.pipeline_mode<synchronous>, transform_indices = @transform_4, window_bounds = array<i64: 1, 1>}, {transform_indices = @transform_5, window_bounds = array<i64: 2, 8, 1>}]} {
    %c0 = arith.constant 0 : index
    %c0_0 = arith.constant 0 : index
    %c0_1 = arith.constant 0 : index
    %0 = vector.load %arg1[%c0, %c0_0, %c0_1] : memref<2x8x32xf32, #tpu.memory_space<vmem>>, vector<2x8x32xf32>
    %c0_2 = arith.constant 0 : index
    %c0_3 = arith.constant 0 : index
    %c0_4 = arith.constant 0 : index
    %1 = vector.load %arg2[%c0_2, %c0_3, %c0_4] : memref<2x8x1xf32, #tpu.memory_space<vmem>>, vector<2x8x1xf32>
    %c0_5 = arith.constant 0 : index
    %c0_6 = arith.constant 0 : index
    %2 = vector.load %arg3[%c0_5, %c0_6] : memref<8x32xf32, #tpu.memory_space<vmem>>, vector<8x32xf32>
    %3 = vector.broadcast %1 : vector<2x8x1xf32> to vector<2x8x32xf32>
    %4 = arith.mulf %0, %3 : vector<2x8x32xf32>
    %5 = vector.shape_cast %2 : vector<8x32xf32> to vector<1x8x32xf32>
    %6 = vector.broadcast %5 : vector<1x8x32xf32> to vector<2x8x32xf32>
    %7 = arith.addf %4, %6 : vector<2x8x32xf32>
    %8 = vector.shape_cast %7 : vector<2x8x32xf32> to vector<16x32xf32>
    %c0_7 = arith.constant 0 : index
    %c0_8 = arith.constant 0 : index
    %9 = vector.load %arg4[%c0_7, %c0_8] : memref<32x128xf32, #tpu.memory_space<vmem>>, vector<32x128xf32>
    %cst = arith.constant dense<0.000000e+00> : vector<16x128xf32>
    %10 = tpu.matmul %8, %9, %cst {dimension_numbers = #tpu.dot_dimension_numbers<[1], [0], [0], [1], [0, 0, 1, 1], [], []>} : vector<16x32xf32>, vector<32x128xf32>, vector<16x128xf32> -> vector<16x128xf32>
    %11 = vector.extract_strided_slice %10 {offsets = [0, 0], sizes = [16, 1], strides = [1, 1]} : vector<16x128xf32> to vector<16x1xf32>
    %12 = vector.extract_strided_slice %10 {offsets = [0, 1], sizes = [16, 1], strides = [1, 1]} : vector<16x128xf32> to vector<16x1xf32>
    %13 = arith.mulf %8, %8 : vector<16x32xf32>
    %cst_9 = arith.constant dense<0.000000e+00> : vector<16xf32>
    %14 = vector.multi_reduction <add>, %13, %cst_9 [1] : vector<16x32xf32> to vector<16xf32>
    %15 = vector.shape_cast %14 : vector<16xf32> to vector<16x1xf32>
    %cst_10 = arith.constant 3.125000e-02 : f32
    %16 = vector.broadcast %cst_10 : f32 to vector<16x1xf32>
    %17 = arith.mulf %15, %16 : vector<16x1xf32>
    %18 = arith.mulf %11, %11 : vector<16x1xf32>
    %19 = arith.subf %17, %18 : vector<16x1xf32>
    %cst_11 = arith.constant 9.99999997E-7 : f32
    %20 = vector.broadcast %cst_11 : f32 to vector<16x1xf32>
    %21 = arith.addf %19, %20 : vector<16x1xf32>
    %22 = math.rsqrt %21 : vector<16x1xf32>
    %23 = arith.mulf %22, %12 : vector<16x1xf32>
    %c0_12 = arith.constant 0 : index
    %c0_13 = arith.constant 0 : index
    %24 = vector.load %arg5[%c0_12, %c0_13] : memref<1x1xf32, #tpu.memory_space<vmem>>, vector<1x1xf32>
    %25 = vector.broadcast %24 : vector<1x1xf32> to vector<16x1xf32>
    %26 = arith.addf %23, %25 : vector<16x1xf32>
    %27 = arith.negf %26 : vector<16x1xf32>
    %28 = math.exp %27 : vector<16x1xf32>
    %cst_14 = arith.constant 1.000000e+00 : f32
    %29 = vector.broadcast %cst_14 : f32 to vector<16x1xf32>
    %30 = arith.addf %29, %28 : vector<16x1xf32>
    %31 = arith.divf %29, %30 : vector<16x1xf32>
    %32 = vector.shape_cast %1 : vector<2x8x1xf32> to vector<16x1xf32>
    %33 = arith.mulf %31, %32 : vector<16x1xf32>
    %34 = vector.shape_cast %33 : vector<16x1xf32> to vector<2x8x1xf32>
    %c0_15 = arith.constant 0 : index
    %c0_16 = arith.constant 0 : index
    %c0_17 = arith.constant 0 : index
    %35 = vector.load %arg6[%c0_15, %c0_16, %c0_17] : memref<2x8x1xf32, #tpu.memory_space<vmem>>, vector<2x8x1xf32>
    tpu.vector_store %arg6[%c0_15, %c0_16, %c0_17], %34 {strides = array<i32>} : memref<2x8x1xf32, #tpu.memory_space<vmem>>, vector<2x8x1xf32>,
    return
  }
  func.func @transform_0(%arg0: i32) -> (i32, i32, i32) {
    %c0_i32 = arith.constant 0 : i32
    %c0_i32_0 = arith.constant 0 : i32
    %c0_i32_1 = arith.constant 0 : i32
    return %arg0, %c0_i32, %c0_i32_0 : i32, i32, i32
  }
  func.func @transform_1(%arg0: i32) -> (i32, i32, i32) {
    %c0_i32 = arith.constant 0 : i32
    %c0_i32_0 = arith.constant 0 : i32
    %c0_i32_1 = arith.constant 0 : i32
    return %arg0, %c0_i32, %c0_i32_0 : i32, i32, i32
  }
  func.func @transform_2(%arg0: i32) -> (i32, i32) {
    %c0_i32 = arith.constant 0 : i32
    %c0_i32_0 = arith.constant 0 : i32
    %c0_i32_1 = arith.constant 0 : i32
    return %c0_i32, %c0_i32_0 : i32, i32
  }
  func.func @transform_3(%arg0: i32) -> (i32, i32) {
    %c0_i32 = arith.constant 0 : i32
    %c0_i32_0 = arith.constant 0 : i32
    %c0_i32_1 = arith.constant 0 : i32
    return %c0_i32, %c0_i32_0 : i32, i32
  }
  func.func @transform_4(%arg0: i32) -> (i32, i32) {
    %c0_i32 = arith.constant 0 : i32
    %c0_i32_0 = arith.constant 0 : i32
    %c0_i32_1 = arith.constant 0 : i32
    return %c0_i32, %c0_i32_0 : i32, i32
  }
  func.func @transform_5(%arg0: i32) -> (i32, i32, i32) {
    %c0_i32 = arith.constant 0 : i32
    %c0_i32_0 = arith.constant 0 : i32
    %c0_i32_1 = arith.constant 0 : i32
    return %arg0, %c0_i32, %c0_i32_0 : i32, i32, i32
  }
}

</mosaic_0001>

<llo_original>
// kernel: tpu_custom_call.1
$region0: #{tpu_custom_call.1}
  #allocation0 [shape = 'u32[]', space=smem, size = 0x4, offset = 0x4, fixed_abs, tag = 'smem constant byte address 0x4 - core index']
  #allocation1 [shape = 'u32[144,128]{1,0:T(1,128)}', space=vmem, size = 0x12000, scoped, tag = 'internal scratch']
  #allocation2 [shape = 'f32[1,1]{1,0:T(1,128)S(1)}', space=vmem, size = 0x200, scoped, tag = 'scoped memory for tpu_custom_call.1']
  %s0 = inlined_call_operand.hbm [shape: f32[2,8,32], index: 0, kind: input, shape index: {}]
  %s1 = inlined_call_operand.vmem [shape: f32[2,8,1], index: 1, kind: input, shape index: {}]
  %s2 = inlined_call_operand.hbm [shape: f32[8,32], index: 2, kind: input, shape index: {}]
  %s3 = inlined_call_operand.vmem [shape: f32[32,128], index: 3, kind: input, shape index: {}]
  %s4 = inlined_call_operand.<no memory space> [shape: f32[1,1], index: 4, kind: input, shape index: {}]
  %s5 = inlined_call_operand.vmem [shape: f32[2,8,1], index: 5, kind: output, shape index: {}]
  %s6 = sld [smem:[#allocation0]]
  $region38: #{tpu_custom_call.1} parent=0
    _
  %s8 = ssub.s32 1, %s6
  %s9 = scalar_select 0, %s8, %s6
  %v10 = vstv %s4
  %11 = vst [vmem:[#allocation2] sm:$0x1] %v10
  $region1: #{tpu_custom_call.1} parent=0
    #allocation3 [shape = 'u8[8192]{0}', space=vmem, size = 0x2000, scoped, tag = 'input window, operand 0, single buffered']
    #allocation4 [shape = 's32[1]{0}', space=sflag, size = 0x4, scoped, tag = 'scoped memory for tpu_custom_call.1']
    #allocation5 [shape = 'u8[4096]{0}', space=vmem, size = 0x1000, scoped, tag = 'input window, operand 2, single buffered']
    #allocation6 [shape = 's32[1]{0}', space=sflag, size = 0x4, scoped, tag = 'scoped memory for tpu_custom_call.1']
    %12 = vsyncpa [#allocation4], 0
    %13 = vsyncpa [#allocation6], 0
    // Predicated region
    $region2: #{tpu_custom_call.1} parent=1 // pred_check
      _
    $region3: #{tpu_custom_call.1} parent=1 // pred_check_branch
      %15 = sbr.rel (0) target = $region5
    $region4: #{tpu_custom_call.1} parent=1 // pred_region
      %s17 = ssub.s32 256, 256
      %18 = vsyncadd [#allocation4], %s17
      %s19 = sshll.u32 [#allocation3], 4
      %s20 = int_to_ptr.vmem [resolvable:$true] %s19
      %25 = dma.hbm_to_vmem [thread:$0]  %s0, 256, %s20, [#allocation4], 128, 128, 8
    $region5: #{tpu_custom_call.1} parent=1 // pred_fallthru
      _
    // Predicated region
    $region6: #{tpu_custom_call.1} parent=1 // pred_check
      _
    $region7: #{tpu_custom_call.1} parent=1 // pred_check_branch
      %27 = sbr.rel (0) target = $region9
    $region8: #{tpu_custom_call.1} parent=1 // pred_region
      _
    $region9: #{tpu_custom_call.1} parent=1 // pred_fallthru
      _
    // Predicated region
    $region10: #{tpu_custom_call.1} parent=1 // pred_check
      _
    $region11: #{tpu_custom_call.1} parent=1 // pred_check_branch
      %29 = sbr.rel (0) target = $region13
    $region12: #{tpu_custom_call.1} parent=1 // pred_region
      %s31 = ssub.s32 128, 128
      %32 = vsyncadd [#allocation6], %s31
      %s34 = sshll.u32 [#allocation5], 4
      %s35 = int_to_ptr.vmem [resolvable:$true] %s34
      %37 = dma.hbm_to_vmem [thread:$0]  %s2, 128, %s35, [#allocation6]
    $region13: #{tpu_custom_call.1} parent=1 // pred_fallthru
      _
    // Predicated region
    $region14: #{tpu_custom_call.1} parent=1 // pred_check
      _
    $region15: #{tpu_custom_call.1} parent=1 // pred_check_branch
      %39 = sbr.rel (0) target = $region17
    $region16: #{tpu_custom_call.1} parent=1 // pred_region
      _
    $region17: #{tpu_custom_call.1} parent=1 // pred_fallthru
      _
    // Predicated region
    $region18: #{tpu_custom_call.1} parent=1 // pred_check
      _
    $region19: #{tpu_custom_call.1} parent=1 // pred_check_branch
      %41 = sbr.rel (0) target = $region21
    $region20: #{tpu_custom_call.1} parent=1 // pred_region
      _
    $region21: #{tpu_custom_call.1} parent=1 // pred_fallthru
      _
    // Predicated region
    $region22: #{tpu_custom_call.1} parent=1 // pred_check
      _
    $region23: #{tpu_custom_call.1} parent=1 // pred_check_branch
      %43 = sbr.rel (0) target = $region25
    $region24: #{tpu_custom_call.1} parent=1 // pred_region
      %44 = dma.done [#allocation4], 256
    $region25: #{tpu_custom_call.1} parent=1 // pred_fallthru
      _
    // Predicated region
    $region26: #{tpu_custom_call.1} parent=1 // pred_check
      _
    $region27: #{tpu_custom_call.1} parent=1 // pred_check_branch
      %46 = sbr.rel (0) target = $region29
    $region28: #{tpu_custom_call.1} parent=1 // pred_region
      %47 = dma.done [#allocation6], 128
    $region29: #{tpu_custom_call.1} parent=1 // pred_fallthru
      _
    %v48 = vld [vmem:[#allocation3] sm:$0xff]
    %v49 = vld [vmem:[#allocation3 + $0x8] sm:$0xff]
    %v50 = vld [vmem:[%s1] sm:$0xff]
    %v51 = vld [vmem:[%s1 + $0x8] sm:$0xff]
    %v52 = vld [vmem:[#allocation5] sm:$0xff]
    %54 = vset.pattern.permute.xlu0 0
    %55 = vperm.xlu0 %54, %v50
    %v56 = vpop.permute.xlu0 %55
    %59 = vset.pattern.permute.xlu0 0
    %60 = vperm.xlu0 %59, %v51
    %v61 = vpop.permute.xlu0 %60
    %v63 = vmul.f32 %v48, %v56
    %v64 = vmul.f32 %v49, %v61
    %v65 = vadd.f32 %v63, %v52
    %v66 = vadd.f32 %v64, %v52
    %v67 = vld [vmem:[%s3] sm:$0xff]
    %v68 = vld [vmem:[%s3 + $0x8] sm:$0xff]
    %v69 = vld [vmem:[%s3 + $0x10] sm:$0xff]
    %v70 = vld [vmem:[%s3 + $0x18] sm:$0xff]
    %vm71 = vcmask 261120
    %v73 = vsel %vm71, %v65, 0
    %v76 = vsel %vm71, %v66, 0
    %78 = vmatprep.subr.mxu0 0.0
    %79 = vmatpush1.msra.mxu0 %v67
    %80 = vmatprep.subr.mxu0 0.0
    %81 = vmatpush1.msra.mxu0 %v68
    %82 = vmatprep.subr.mxu0 0.0
    %83 = vmatpush1.msra.mxu0 %v69
    %84 = vmatprep.subr.mxu0 0.0
    %85 = vmatpush1.msra.mxu0 %v70
    %86 = vmatprep.subr.mxu0 0.0
    %87 = vmatpush1.msra.mxu0 0.0
    %88 = vmatprep.subr.mxu0 0.0
    %89 = vmatpush1.msra.mxu0 0.0
    %90 = vmatprep.subr.mxu0 0.0
    %91 = vmatpush1.msra.mxu0 0.0
    %92 = vmatprep.subr.mxu0 0.0
    %93 = vmatpush1.msra.mxu0 0.0
    %94 = vmatprep.subr.mxu0 0.0
    %95 = vmatpush1.msra.mxu0 0.0
    %96 = vmatprep.subr.mxu0 0.0
    %97 = vmatpush1.msra.mxu0 0.0
    %98 = vmatprep.subr.mxu0 0.0
    %99 = vmatpush1.msra.mxu0 0.0
    %100 = vmatprep.subr.mxu0 0.0
    %101 = vmatpush1.msra.mxu0 0.0
    %102 = vmatprep.subr.mxu0 0.0
    %103 = vmatpush1.msra.mxu0 0.0
    %104 = vmatprep.subr.mxu0 0.0
    %105 = vmatpush1.msra.mxu0 0.0
    %106 = vmatprep.subr.mxu0 0.0
    %107 = vmatpush1.msra.mxu0 0.0
    %108 = vmatprep.subr.mxu0 0.0
    %109 = vmatpush1.msra.mxu0 0.0
    %110 = vmatprep.subr.mxu0 0.0
    %111 = vmatpush1.msra.mxu0 0.0
    %112 = vmatprep.subr.mxu0 0.0
    %113 = vmatpush1.msra.mxu0 0.0
    %114 = vmatprep.subr.mxu0 0.0
    %115 = vmatpush1.msra.mxu0 0.0
    %116 = vmatprep.subr.mxu0 0.0
    %117 = vmatpush1.msra.mxu0 0.0
    %118 = vmatprep.subr.mxu0 0.0
    %119 = vmatpush1.msra.mxu0 0.0
    %120 = vmatprep.subr.mxu0 0.0
    %121 = vmatpush1.msra.mxu0 0.0
    %122 = vmatprep.subr.mxu0 0.0
    %123 = vmatpush1.msra.mxu0 0.0
    %124 = vmatprep.subr.mxu0 0.0
    %125 = vmatpush1.msra.mxu0 0.0
    %126 = vmatprep.subr.mxu0 0.0
    %127 = vmatpush1.msra.mxu0 0.0
    %128 = vmatprep.subr.mxu0 0.0
    %129 = vmatpush1.msra.mxu0 0.0
    %130 = vmatprep.subr.mxu0 0.0
    %131 = vmatpush1.msra.mxu0 0.0
    %132 = vmatprep.subr.mxu0 0.0
    %133 = vmatpush1.msra.mxu0 0.0
    %134 = vmatprep.subr.mxu0 0.0
    %135 = vmatpush1.msra.mxu0 0.0
    %136 = vmatprep.subr.mxu0 0.0
    %137 = vmatpush1.msra.mxu0 0.0
    %138 = vmatprep.subr.mxu0 0.0
    %139 = vmatpush1.msra.mxu0 0.0
    %140 = vmatprep.subr.mxu0 0.0
    %141 = vmatpush1.msra.mxu0 0.0
    %142 = vmatprep.mubr.f32.mxu0 0.0
    %143 = vmatmul.mubr.f32.gmra.mrb[0].mxu0 %v73
    %v144 = vpop.f32.mrb[0].mxu0
    %v145 = vadd.f32 0.0, %v144
    %v146 = vpop.f32.mrb[0].mxu0
    %147 = vmatprep.mubr.f32.mxu0 0.0
    %148 = vmatmul.mubr.f32.gmra.mrb[0].mxu0 %v76
    %v149 = vpop.f32.mrb[0].mxu0
    %v150 = vadd.f32 0.0, %v149
    %v151 = vpop.f32.mrb[0].mxu0
    %152 = vdwg.mxu0
    %v153 = vmul.f32 %v65, %v65
    %v154 = vmul.f32 %v66, %v66
    %v155 = vsel %vm71, %v153, 0.0
    %156 = vadd.xlane.f32.xlu0 %v155
    %v157 = vpop.xlane.xlu0 %156
    %v158 = vsel %vm71, %v154, 0.0
    %159 = vadd.xlane.f32.xlu0 %v158
    %v160 = vpop.xlane.xlu0 %159
    %v161 = vmul.f32 %v157, 0.03125
    %v162 = vmul.f32 %v160, 0.03125
    %v163 = vmul.f32 %v145, %v145
    %v164 = vmul.f32 %v150, %v150
    %v165 = vsub.f32 %v161, %v163
    %v166 = vsub.f32 %v162, %v164
    %v167 = vadd.f32 %v165, 1e-06
    %v168 = vadd.f32 %v166, 1e-06
    %v169 = vrsqrt.pop %v167
    %v170 = vrsqrt.pop %v168
    %173 = vrot.lane.b32.xlu0 %v145, 127
    %v174 = vpop.permute.xlu0 %173
    %175 = vrot.lane.b32.xlu0 %v150, 127
    %v176 = vpop.permute.xlu0 %175
    %v179 = vmul.f32 %v169, %v174
    %v180 = vmul.f32 %v170, %v176
    %v181 = vld [vmem:[#allocation2] sm:$0x1]
    %v183 = vlaneseq
    %v184 = vshrl.u32 %v183, 7
    %v185 = vsub.s32 0, %v184
    %v186 = vrot.slane %v181, %v185
    %v188 = vadd.f32 %v179, %v186
    %v189 = vadd.f32 %v180, %v186
    %v190 = vxor.u32 %v188, 2147483648
    %v191 = vxor.u32 %v189, 2147483648
    %v192 = vmul.f32 %v190, 1.442695
    %v193 = vpow.pop %v192
    %v194 = vmul.f32 %v191, 1.442695
    %v195 = vpow.pop %v194
    %v196 = vadd.f32 %v193, 1.0
    %v197 = vadd.f32 %v195, 1.0
    %v198 = vrcp.pop %v196
    %v199 = vmul.f32 1.0, %v198
    %v200 = vrcp.pop %v197
    %v201 = vmul.f32 1.0, %v200
    %v202 = vmul.f32 %v199, %v50
    %v203 = vmul.f32 %v201, %v51
    %vm204 = vcmask 7168
    %205 = vst.msk [vmem:[%s5] sm:$0xff] %vm204, %v202
    %206 = vst.msk [vmem:[%s5 + $0x8] sm:$0xff] %vm204, %v203
    // Predicated region
    $region30: #{tpu_custom_call.1} parent=1 // pred_check
      _
    $region31: #{tpu_custom_call.1} parent=1 // pred_check_branch
      %208 = sbr.rel (0) target = $region33
    $region32: #{tpu_custom_call.1} parent=1 // pred_region
      _
    $region33: #{tpu_custom_call.1} parent=1 // pred_fallthru
      _
    // Predicated region
    $region34: #{tpu_custom_call.1} parent=1 // pred_check
      _
    $region35: #{tpu_custom_call.1} parent=1 // pred_check_branch
      %210 = sbr.rel (0) target = $region37
    $region36: #{tpu_custom_call.1} parent=1 // pred_region
      _
    $region37: #{tpu_custom_call.1} parent=1 // pred_fallthru
      _
    %211 = vsyncpa [#allocation4], 1
    %212 = vsyncpa [#allocation6], 1

</llo_original>
